<compile_context>
chip_gen: v7x
topology: tpu7x:2x2x1
jax: 0.10.0
libtpu: 0.0.40
codegen_flags: <defaults>
</compile_context>

<pallas_src>
import math

import jax
import jax.numpy as jnp
from jax.experimental import pallas as pl
from jax.experimental.pallas import tpu as pltpu


def calculate_laplacian_with_self_loop(matrix: jnp.ndarray) -> jnp.ndarray:
    """Plain-JAX parameter glue (buffer setup in the PyTorch module).

    Note: faithfully matches the provided spec, which does NOT add the
    identity itself -- the caller must pass an adjacency that already has
    self loops (as done in __main__) to avoid inf rows for isolated nodes.
    """
    row_sum = matrix.sum(axis=1)
    d_inv_sqrt = jnp.power(row_sum, -0.5).reshape(-1)
    d_inv_sqrt = jnp.where(jnp.isinf(d_inv_sqrt), 0.0, d_inv_sqrt)
    d_mat_inv_sqrt = jnp.diag(d_inv_sqrt)
    normalized_laplacian = (matrix @ d_mat_inv_sqrt).T @ d_mat_inv_sqrt
    return normalized_laplacian


def _gcn_kernel(l_ref, xw_ref, o_ref):
    # l_ref : (row_block, n)     laplacian row tile for this grid step
    # xw_ref: (n, bt*o)          pre-projected X @ W columns, VMEM-resident
    # o_ref : (row_block, bt*o)  lane-dense output slab (bt*o multiple of 128)
    acc = jnp.dot(l_ref[...], xw_ref[...],
                  preferred_element_type=jnp.float32)
    o_ref[...] = jnp.tanh(acc).astype(o_ref.dtype)


def _pick_row_block(n: int) -> int:
    # Single grid step for small problems: per-step pipeline overhead
    # (~0.35 us) dominates sub-us compute, and v5e/v6e have one TensorCore.
    # Only row-split once each tile has meaningful MXU work (n >= 256); the
    # split also keeps the L tile VMEM-portable on v7x (64 MiB) as n grows.
    if n < 256:
        return n
    for blk in (256, 128, 64, 32, 16, 8):
        if n % blk == 0:
            return blk
    return n


def gcn_forward(x: jnp.ndarray, laplacian: jnp.ndarray,
                weights: jnp.ndarray, *, use_bf16: bool = False) -> jnp.ndarray:
    """x: (bs, t, n, c) f32 -> (bs, t, n, output_dim) f32."""
    bs, t, n, c = x.shape
    o = weights.shape[1]
    bt = bs * t

    # --- reassociated input projection + layout plumbing --------------------
    # Plain XLA, fused under jit; the graph convolution (the only matmul that
    # touches the n x n laplacian) runs in the Pallas kernel.
    #   xw_cols[j, (b*t + tt)*o + oo] = sum_c x[b, tt, j, c] * W[c, oo]
    xw = jnp.einsum("bnc,co->bno", x.reshape(bt, n, c), weights)
    xw_cols = xw.transpose(1, 0, 2).reshape(n, bt * o)

    # If bt*o is not a multiple of 128, stores become masked (still correct,
    # just loses the lane-dense layout win). Here bt*o = 512.
    row_block = _pick_row_block(n)
    assert n % row_block == 0
    grid = (n // row_block,)

    # Optional bf16 operands for large n (MXU-native, halves DMA bytes).
    compute_dtype = jnp.bfloat16 if use_bf16 else x.dtype
    l_in = laplacian.astype(compute_dtype)
    xw_in = xw_cols.astype(compute_dtype)

    out_slab = pl.pallas_call(
        _gcn_kernel,
        out_shape=jax.ShapeDtypeStruct((n, bt * o), jnp.float32),
        grid_spec=pltpu.PrefetchScalarGridSpec(
            num_scalar_prefetch=0,
            grid=grid,
            in_specs=[
                # laplacian rows handled this step
                pl.BlockSpec((row_block, n), lambda r: (r, 0)),
                # projected columns: constant index map -> VMEM-resident
                pl.BlockSpec((n, bt * o), lambda r: (0, 0)),
            ],
            # lane-dense output slab: last dim bt*o = 512 (multiple of 128)
            out_specs=pl.BlockSpec((row_block, bt * o), lambda r: (r, 0)),
        ),
        compiler_params=pltpu.CompilerParams(
            dimension_semantics=("parallel",)),
    )(l_in, xw_in)

    # (n, bt*o) -> (bs, t, n, o)
    return out_slab.reshape(n, bt, o).transpose(1, 0, 2).reshape(bs, t, n, o)


def gcn_reference(x, laplacian, weights):
    ax = jnp.einsum("ij,btjc->btic", laplacian, x)
    return jnp.tanh(jnp.einsum("btic,co->btio", ax, weights))


if __name__ == "__main__":
    key = jax.random.PRNGKey(0)
    k_adj, k_w, k_x = jax.random.split(key, 3)

    bs, t, n = 2, 8, 16
    input_dim, output_dim = 4, 32

    # Deterministic symmetric adjacency with self loops (no inf in D^-1/2).
    a = (jax.random.uniform(k_adj, (n, n)) > 0.6).astype(jnp.float32)
    adj = jnp.clip(a + a.T + jnp.eye(n, dtype=jnp.float32), 0.0, 1.0)
    laplacian = calculate_laplacian_with_self_loop(adj)

    # Xavier-uniform init with tanh gain (5/3), matching reset_parameters().
    gain = 5.0 / 3.0
    bound = gain * math.sqrt(6.0 / (input_dim + output_dim))
    weights = jax.random.uniform(
        k_w, (input_dim, output_dim), minval=-bound, maxval=bound,
        dtype=jnp.float32)

    x = jax.random.normal(k_x, (bs, t, n, input_dim), dtype=jnp.float32)

    fwd = jax.jit(gcn_forward, static_argnames=("use_bf16",))
    out = jax.block_until_ready(fwd(x, laplacian, weights))

    ref = gcn_reference(x, laplacian, weights)
    assert out.shape == (bs, t, n, output_dim)
    assert jnp.allclose(out, ref, atol=1e-5, rtol=1e-5)

    print("KERNEL_OK")
</pallas_src>

<mosaic_0001>
module attributes {stable_mosaic.version = 11 : i64} {
  func.func @_gcn_kernel(%arg0: i32, %arg1: memref<16x16xf32, #tpu.memory_space<vmem>>, %arg2: memref<16x512xf32, #tpu.memory_space<vmem>>, %arg3: memref<16x512xf32, #tpu.memory_space<vmem>>) attributes {dimension_semantics = [#tpu.dimension_semantics<parallel>], iteration_bounds = array<i64: 1>, scalar_prefetch = 0 : i64, scratch_operands = 0 : i64, tpu.core_type = #tpu.core_type<tc>, window_params = [{transform_indices = @transform_0, window_bounds = array<i64: 16, 16>}, {pipeline_mode = #tpu.pipeline_mode<synchronous>, transform_indices = @transform_1, window_bounds = array<i64: 16, 512>}, {transform_indices = @transform_2, window_bounds = array<i64: 16, 512>}]} {
    %c0 = arith.constant 0 : index
    %c0_0 = arith.constant 0 : index
    %0 = vector.load %arg1[%c0, %c0_0] : memref<16x16xf32, #tpu.memory_space<vmem>>, vector<16x16xf32>
    %c0_1 = arith.constant 0 : index
    %c0_2 = arith.constant 0 : index
    %1 = vector.load %arg2[%c0_1, %c0_2] : memref<16x512xf32, #tpu.memory_space<vmem>>, vector<16x512xf32>
    %cst = arith.constant dense<0.000000e+00> : vector<16x512xf32>
    %2 = tpu.matmul %0, %1, %cst {dimension_numbers = #tpu.dot_dimension_numbers<[1], [0], [0], [1], [0, 0, 1, 1], [], []>} : vector<16x16xf32>, vector<16x512xf32>, vector<16x512xf32> -> vector<16x512xf32>
    %3 = math.tanh %2 : vector<16x512xf32>
    %c0_3 = arith.constant 0 : index
    %c0_4 = arith.constant 0 : index
    %4 = vector.load %arg3[%c0_3, %c0_4] : memref<16x512xf32, #tpu.memory_space<vmem>>, vector<16x512xf32>
    tpu.vector_store %arg3[%c0_3, %c0_4], %3 {strides = array<i32>} : memref<16x512xf32, #tpu.memory_space<vmem>>, vector<16x512xf32>,
    return
  }
  func.func @transform_0(%arg0: i32) -> (i32, i32) {
    %c0_i32 = arith.constant 0 : i32
    %c0_i32_0 = arith.constant 0 : i32
    return %arg0, %c0_i32 : i32, i32
  }
  func.func @transform_1(%arg0: i32) -> (i32, i32) {
    %c0_i32 = arith.constant 0 : i32
    %c0_i32_0 = arith.constant 0 : i32
    %c0_i32_1 = arith.constant 0 : i32
    return %c0_i32, %c0_i32_0 : i32, i32
  }
  func.func @transform_2(%arg0: i32) -> (i32, i32) {
    %c0_i32 = arith.constant 0 : i32
    %c0_i32_0 = arith.constant 0 : i32
    return %arg0, %c0_i32 : i32, i32
  }
}

</mosaic_0001>

<llo_original>
// kernel: gcn_forward.1
$region0: #{gcn_forward.1}
  #allocation0 [shape = 'u32[]', space=smem, size = 0x4, offset = 0x4, fixed_abs, tag = 'smem constant byte address 0x4 - core index']
  #allocation1 [shape = 'u32[144,128]{1,0:T(1,128)}', space=vmem, size = 0x12000, scoped, tag = 'internal scratch']
  %s0 = inlined_call_operand.vmem [shape: f32[16,16], index: 0, kind: input, shape index: {}]
  %s1 = inlined_call_operand.vmem [shape: f32[16,512], index: 1, kind: input, shape index: {}]
  %s2 = inlined_call_operand.vmem [shape: f32[16,512], index: 2, kind: output, shape index: {}]
  %s3 = sld [smem:[#allocation0]]
  $region18: #{gcn_forward.1} parent=0
    _
  %s5 = ssub.s32 1, %s3
  %s6 = scalar_select 0, %s5, %s3
  // Predicated region
  $region2: #{gcn_forward.1} parent=0 // pred_check
    _
  $region3: #{gcn_forward.1} parent=0 // pred_check_branch
    %8 = sbr.rel (0) target = $region5
  $region4: #{gcn_forward.1} parent=0 // pred_region
    _
  $region5: #{gcn_forward.1} parent=0 // pred_fallthru
    _
  // Predicated region
  $region6: #{gcn_forward.1} parent=0 // pred_check
    _
  $region7: #{gcn_forward.1} parent=0 // pred_check_branch
    %10 = sbr.rel (0) target = $region9
  $region8: #{gcn_forward.1} parent=0 // pred_region
    _
  $region9: #{gcn_forward.1} parent=0 // pred_fallthru
    _
  %v11 = vld [vmem:[%s0] sm:$0xff]
  %v12 = vld [vmem:[%s0 + $0x8] sm:$0xff]
  %v13 = vld [vmem:[%s1] sm:$0xff]
  %v14 = vld [vmem:[%s1 + $0x8] sm:$0xff]
  %v15 = vld [vmem:[%s1 + $0x10] sm:$0xff]
  %v16 = vld [vmem:[%s1 + $0x18] sm:$0xff]
  %v17 = vld [vmem:[%s1 + $0x20] sm:$0xff]
  %v18 = vld [vmem:[%s1 + $0x28] sm:$0xff]
  %v19 = vld [vmem:[%s1 + $0x30] sm:$0xff]
  %v20 = vld [vmem:[%s1 + $0x38] sm:$0xff]
  %vm21 = vcmask 130048
  %v23 = vsel %vm21, %v11, 0
  %v26 = vsel %vm21, %v12, 0
  %28 = vmatprep.subr.mxu0 %v14
  %29 = vmatpush1.msra.mxu0 %v13
  %30 = vmatprep.subr.mxu0 %v18
  %31 = vmatpush1.msra.mxu0 %v17
  %32 = vmatprep.subr.mxu0 0.0
  %33 = vmatpush1.msra.mxu0 0.0
  %34 = vmatprep.subr.mxu0 0.0
  %35 = vmatpush1.msra.mxu0 0.0
  %36 = vmatprep.subr.mxu0 0.0
  %37 = vmatpush1.msra.mxu0 0.0
  %38 = vmatprep.subr.mxu0 0.0
  %39 = vmatpush1.msra.mxu0 0.0
  %40 = vmatprep.subr.mxu0 0.0
  %41 = vmatpush1.msra.mxu0 0.0
  %42 = vmatprep.subr.mxu0 0.0
  %43 = vmatpush1.msra.mxu0 0.0
  %44 = vmatprep.subr.mxu0 0.0
  %45 = vmatpush1.msra.mxu0 0.0
  %46 = vmatprep.subr.mxu0 0.0
  %47 = vmatpush1.msra.mxu0 0.0
  %48 = vmatprep.subr.mxu0 0.0
  %49 = vmatpush1.msra.mxu0 0.0
  %50 = vmatprep.subr.mxu0 0.0
  %51 = vmatpush1.msra.mxu0 0.0
  %52 = vmatprep.subr.mxu0 0.0
  %53 = vmatpush1.msra.mxu0 0.0
  %54 = vmatprep.subr.mxu0 0.0
  %55 = vmatpush1.msra.mxu0 0.0
  %56 = vmatprep.subr.mxu0 0.0
  %57 = vmatpush1.msra.mxu0 0.0
  %58 = vmatprep.subr.mxu0 0.0
  %59 = vmatpush1.msra.mxu0 0.0
  %60 = vmatprep.subr.mxu0 0.0
  %61 = vmatpush1.msra.mxu0 0.0
  %62 = vmatprep.subr.mxu0 0.0
  %63 = vmatpush1.msra.mxu0 0.0
  %64 = vmatprep.subr.mxu0 0.0
  %65 = vmatpush1.msra.mxu0 0.0
  %66 = vmatprep.subr.mxu0 0.0
  %67 = vmatpush1.msra.mxu0 0.0
  %68 = vmatprep.subr.mxu0 0.0
  %69 = vmatpush1.msra.mxu0 0.0
  %70 = vmatprep.subr.mxu0 0.0
  %71 = vmatpush1.msra.mxu0 0.0
  %72 = vmatprep.subr.mxu0 0.0
  %73 = vmatpush1.msra.mxu0 0.0
  %74 = vmatprep.subr.mxu0 0.0
  %75 = vmatpush1.msra.mxu0 0.0
  %76 = vmatprep.subr.mxu0 0.0
  %77 = vmatpush1.msra.mxu0 0.0
  %78 = vmatprep.subr.mxu0 0.0
  %79 = vmatpush1.msra.mxu0 0.0
  %80 = vmatprep.subr.mxu0 0.0
  %81 = vmatpush1.msra.mxu0 0.0
  %82 = vmatprep.subr.mxu0 0.0
  %83 = vmatpush1.msra.mxu0 0.0
  %84 = vmatprep.subr.mxu0 0.0
  %85 = vmatpush1.msra.mxu0 0.0
  %86 = vmatprep.subr.mxu0 0.0
  %87 = vmatpush1.msra.mxu0 0.0
  %88 = vmatprep.subr.mxu0 0.0
  %89 = vmatpush1.msra.mxu0 0.0
  %90 = vmatprep.subr.mxu0 0.0
  %91 = vmatpush1.msra.mxu0 0.0
  %92 = vmatprep.mubr.f32.mxu0 0.0
  %93 = vmatmul.mubr.f32.gmra.mrb[0].mxu0 %v23
  %v94 = vpop.f32.mrb[0].mxu0
  %v95 = vadd.f32 0.0, %v94
  %v96 = vpop.f32.mrb[0].mxu0
  %v97 = vadd.f32 0.0, %v96
  %98 = vmatprep.mubr.f32.mxu0 0.0
  %99 = vmatmul.mubr.f32.gmra.mrb[0].mxu0 %v26
  %v100 = vpop.f32.mrb[0].mxu0
  %v101 = vadd.f32 0.0, %v100
  %v102 = vpop.f32.mrb[0].mxu0
  %v103 = vadd.f32 0.0, %v102
  %104 = vdwg.mxu0
  %105 = vmatprep.subr.mxu0 %v16
  %106 = vmatpush1.msra.mxu0 %v15
  %107 = vmatprep.subr.mxu0 %v20
  %108 = vmatpush1.msra.mxu0 %v19
  %109 = vmatprep.subr.mxu0 0.0
  %110 = vmatpush1.msra.mxu0 0.0
  %111 = vmatprep.subr.mxu0 0.0
  %112 = vmatpush1.msra.mxu0 0.0
  %113 = vmatprep.subr.mxu0 0.0
  %114 = vmatpush1.msra.mxu0 0.0
  %115 = vmatprep.subr.mxu0 0.0
  %116 = vmatpush1.msra.mxu0 0.0
  %117 = vmatprep.subr.mxu0 0.0
  %118 = vmatpush1.msra.mxu0 0.0
  %119 = vmatprep.subr.mxu0 0.0
  %120 = vmatpush1.msra.mxu0 0.0
  %121 = vmatprep.subr.mxu0 0.0
  %122 = vmatpush1.msra.mxu0 0.0
  %123 = vmatprep.subr.mxu0 0.0
  %124 = vmatpush1.msra.mxu0 0.0
  %125 = vmatprep.subr.mxu0 0.0
  %126 = vmatpush1.msra.mxu0 0.0
  %127 = vmatprep.subr.mxu0 0.0
  %128 = vmatpush1.msra.mxu0 0.0
  %129 = vmatprep.subr.mxu0 0.0
  %130 = vmatpush1.msra.mxu0 0.0
  %131 = vmatprep.subr.mxu0 0.0
  %132 = vmatpush1.msra.mxu0 0.0
  %133 = vmatprep.subr.mxu0 0.0
  %134 = vmatpush1.msra.mxu0 0.0
  %135 = vmatprep.subr.mxu0 0.0
  %136 = vmatpush1.msra.mxu0 0.0
  %137 = vmatprep.subr.mxu0 0.0
  %138 = vmatpush1.msra.mxu0 0.0
  %139 = vmatprep.subr.mxu0 0.0
  %140 = vmatpush1.msra.mxu0 0.0
  %141 = vmatprep.subr.mxu0 0.0
  %142 = vmatpush1.msra.mxu0 0.0
  %143 = vmatprep.subr.mxu0 0.0
  %144 = vmatpush1.msra.mxu0 0.0
  %145 = vmatprep.subr.mxu0 0.0
  %146 = vmatpush1.msra.mxu0 0.0
  %147 = vmatprep.subr.mxu0 0.0
  %148 = vmatpush1.msra.mxu0 0.0
  %149 = vmatprep.subr.mxu0 0.0
  %150 = vmatpush1.msra.mxu0 0.0
  %151 = vmatprep.subr.mxu0 0.0
  %152 = vmatpush1.msra.mxu0 0.0
  %153 = vmatprep.subr.mxu0 0.0
  %154 = vmatpush1.msra.mxu0 0.0
  %155 = vmatprep.subr.mxu0 0.0
  %156 = vmatpush1.msra.mxu0 0.0
  %157 = vmatprep.subr.mxu0 0.0
  %158 = vmatpush1.msra.mxu0 0.0
  %159 = vmatprep.subr.mxu0 0.0
  %160 = vmatpush1.msra.mxu0 0.0
  %161 = vmatprep.subr.mxu0 0.0
  %162 = vmatpush1.msra.mxu0 0.0
  %163 = vmatprep.subr.mxu0 0.0
  %164 = vmatpush1.msra.mxu0 0.0
  %165 = vmatprep.subr.mxu0 0.0
  %166 = vmatpush1.msra.mxu0 0.0
  %167 = vmatprep.subr.mxu0 0.0
  %168 = vmatpush1.msra.mxu0 0.0
  %169 = vmatprep.mubr.f32.mxu0 0.0
  %170 = vmatmul.mubr.f32.gmra.mrb[0].mxu0 %v23
  %v171 = vpop.f32.mrb[0].mxu0
  %v172 = vadd.f32 0.0, %v171
  %v173 = vpop.f32.mrb[0].mxu0
  %v174 = vadd.f32 0.0, %v173
  %175 = vmatprep.mubr.f32.mxu0 0.0
  %176 = vmatmul.mubr.f32.gmra.mrb[0].mxu0 %v26
  %v177 = vpop.f32.mrb[0].mxu0
  %v178 = vadd.f32 0.0, %v177
  %v179 = vpop.f32.mrb[0].mxu0
  %v180 = vadd.f32 0.0, %v179
  %181 = vdwg.mxu0
  %v182 = vtanh.pop %v95
  %v183 = vtanh.pop %v97
  %v184 = vtanh.pop %v172
  %v185 = vtanh.pop %v174
  %v186 = vtanh.pop %v101
  %v187 = vtanh.pop %v103
  %v188 = vtanh.pop %v178
  %v189 = vtanh.pop %v180
  %190 = vst [vmem:[%s2] sm:$0xff] %v182
  %191 = vst [vmem:[%s2 + $0x8] sm:$0xff] %v183
  %192 = vst [vmem:[%s2 + $0x10] sm:$0xff] %v184
  %193 = vst [vmem:[%s2 + $0x18] sm:$0xff] %v185
  %194 = vst [vmem:[%s2 + $0x20] sm:$0xff] %v186
  %195 = vst [vmem:[%s2 + $0x28] sm:$0xff] %v187
  %196 = vst [vmem:[%s2 + $0x30] sm:$0xff] %v188
  %197 = vst [vmem:[%s2 + $0x38] sm:$0xff] %v189
  // Predicated region
  $region10: #{gcn_forward.1} parent=0 // pred_check
    _
  $region11: #{gcn_forward.1} parent=0 // pred_check_branch
    %199 = sbr.rel (0) target = $region13
  $region12: #{gcn_forward.1} parent=0 // pred_region
    _
  $region13: #{gcn_forward.1} parent=0 // pred_fallthru
    _
  // Predicated region
  $region14: #{gcn_forward.1} parent=0 // pred_check
    _
  $region15: #{gcn_forward.1} parent=0 // pred_check_branch
    %201 = sbr.rel (0) target = $region17
  $region16: #{gcn_forward.1} parent=0 // pred_region
    _
  $region17: #{gcn_forward.1} parent=0 // pred_fallthru
    _

</llo_original>
